<compile_context>
chip_gen: v7x
topology: tpu7x:2x2x1
jax: 0.10.0
libtpu: 0.0.40
codegen_flags: <defaults>
</compile_context>

<pallas_src>
import math
import functools

import jax
import jax.numpy as jnp
from jax.experimental import pallas as pl
from jax.experimental.pallas import tpu as pltpu


def _silu(z):
    # z * sigmoid(z) == z / (1 + exp(-z)); exp lowers to the EUP slot.
    return z / (1.0 + jnp.exp(-z))


def _gau_kernel(x_ref, wu_ref, wv_ref, wb_ref, g_ref, b_ref, wo_ref, rs_ref,
                o_ref, *, ln_scale, ln_g, eps, inv_sqrt_s, shortcut):
    x = x_ref[...]                                           # (BB, T, C)

    # ScaleNorm over the feature (lane) axis.
    ssq = jnp.sum(x * x, axis=-1, keepdims=True)             # (BB, T, 1)
    norm = jnp.maximum(jnp.sqrt(ssq) * ln_scale, eps)
    xn = x * (ln_g / norm)

    # Fused uv projection done as three lane-aligned matmuls + SiLU
    # (identical to SiLU(x @ W_uv) followed by split).
    u = _silu(jnp.einsum("btc,ce->bte", xn, wu_ref[...],
                         preferred_element_type=jnp.float32))
    v = _silu(jnp.einsum("btc,ce->bte", xn, wv_ref[...],
                         preferred_element_type=jnp.float32))
    base = _silu(jnp.einsum("btc,cs->bts", xn, wb_ref[...],
                            preferred_element_type=jnp.float32))

    q = base * g_ref[0:1, :] + b_ref[0:1, :]                 # (BB, T, s)
    k = base * g_ref[1:2, :] + b_ref[1:2, :]                 # (BB, T, s)

    # Batched q @ k^T (contraction on the s axis, no explicit transpose).
    qk = jnp.einsum("bts,bus->btu", q, k,
                    preferred_element_type=jnp.float32)      # (BB, T, T)
    kern = jnp.square(jnp.maximum(qk * inv_sqrt_s, 0.0))
    attn = jnp.einsum("btu,bue->bte", kern, v,
                      preferred_element_type=jnp.float32)    # (BB, T, e)
    y = jnp.einsum("bte,eo->bto", u * attn, wo_ref[...],
                   preferred_element_type=jnp.float32)       # (BB, T, C_out)

    if shortcut:
        y = x * rs_ref[...] + y                              # Scale() residual
    o_ref[...] = y.astype(o_ref.dtype)


def gau_block_forward(x, params, *, s=16, eps=1e-5, batch_block=None):
    """x: (B, T, C) float32 -> (B, T, C_out) float32."""
    B, T, C = x.shape
    wu, wv, wb = params["wu"], params["wv"], params["wb"]
    gamma, beta = params["gamma"], params["beta"]
    wo, rs = params["wo"], params["res_scale"]
    e = wu.shape[1]
    C_out = wo.shape[1]
    shortcut = (C == C_out)

    # Batch tile size: keep at least two grid steps when possible (megacore
    # split + pipelining) but pack several batch elements per step for large
    # batches to amortize per-step overhead.  Per-batch VMEM footprint is
    # only tens of KiB, so 8 per step is conservative.
    if batch_block is None:
        batch_block = max(1, min(8, pl.cdiv(B, 2)))
    BB = min(batch_block, B)
    grid = (pl.cdiv(B, BB),)

    kernel = functools.partial(
        _gau_kernel,
        ln_scale=C ** -0.5,
        ln_g=float(params["ln_g"]),
        eps=eps,
        inv_sqrt_s=1.0 / math.sqrt(s),
        shortcut=shortcut,
    )

    flops = 2 * B * T * (2 * C * e + C * s + T * s + T * e + e * C_out)
    transcendentals = B * T * (2 * e + s)
    bytes_accessed = 4 * (x.size + wu.size + wv.size + wb.size + wo.size
                          + gamma.size + beta.size + rs.size + B * T * C_out)

    return pl.pallas_call(
        kernel,
        out_shape=jax.ShapeDtypeStruct((B, T, C_out), x.dtype),
        grid_spec=pltpu.PrefetchScalarGridSpec(
            num_scalar_prefetch=0,
            grid=grid,
            in_specs=[
                pl.BlockSpec((BB, T, C), lambda b: (b, 0, 0)),     # x tile
                pl.BlockSpec((C, e), lambda b: (0, 0)),            # Wu (resident)
                pl.BlockSpec((C, e), lambda b: (0, 0)),            # Wv
                pl.BlockSpec((C, s), lambda b: (0, 0)),            # Wb
                pl.BlockSpec((2, s), lambda b: (0, 0)),            # gamma
                pl.BlockSpec((2, s), lambda b: (0, 0)),            # beta
                pl.BlockSpec((e, C_out), lambda b: (0, 0)),        # Wo
                pl.BlockSpec((1, C), lambda b: (0, 0)),            # res_scale
            ],
            out_specs=pl.BlockSpec((BB, T, C_out), lambda b: (b, 0, 0)),
        ),
        compiler_params=pltpu.CompilerParams(
            dimension_semantics=("parallel",),
            vmem_limit_bytes=32 * 1024 * 1024,
        ),
        cost_estimate=pl.CostEstimate(
            flops=int(flops),
            transcendentals=int(transcendentals),
            bytes_accessed=int(bytes_accessed)),
    )(x, wu, wv, wb, gamma, beta, wo, rs)


def init_params(key, in_dims=32, out_dims=32, expansion_factor=2, s=16):
    """Deterministic init mirroring the torch module; weights stored
    pre-transposed ((C_in, C_out) layout) and pre-split (Wu/Wv/Wb)."""
    e = in_dims * expansion_factor
    k_uv, k_o, k_g, k_b = jax.random.split(key, 4)
    # nn.init.xavier_uniform_ on the (2e+s, in_dims) uv weight.
    bound_uv = math.sqrt(6.0 / (in_dims + 2 * e + s))
    w_uv_t = jax.random.uniform(k_uv, (in_dims, 2 * e + s), jnp.float32,
                                -bound_uv, bound_uv)
    # nn.Linear default-style init for the output projection.
    bound_o = 1.0 / math.sqrt(e)
    w_o_t = jax.random.uniform(k_o, (e, out_dims), jnp.float32,
                               -bound_o, bound_o)
    gamma = jax.random.uniform(k_g, (2, s), jnp.float32, 0.0, 1.0)
    beta = jax.random.uniform(k_b, (2, s), jnp.float32, 0.0, 1.0)
    return dict(
        wu=w_uv_t[:, :e],
        wv=w_uv_t[:, e:2 * e],
        wb=w_uv_t[:, 2 * e:],
        wo=w_o_t,
        gamma=gamma,
        beta=beta,
        res_scale=jnp.ones((1, in_dims), jnp.float32),   # Scale(dim), init=1
        ln_g=1.0,                                        # ScaleNorm.g, init=1
    )


def gau_block_reference(x, params, *, s=16, eps=1e-5):
    """Pure-JAX reference matching the PyTorch GAUBlock defaults."""
    C = x.shape[-1]
    hi = jax.lax.Precision.HIGHEST
    norm = jnp.linalg.norm(x, axis=-1, keepdims=True) * (C ** -0.5)
    xn = x / jnp.maximum(norm, eps) * params["ln_g"]
    u = jax.nn.silu(jnp.matmul(xn, params["wu"], precision=hi))
    v = jax.nn.silu(jnp.matmul(xn, params["wv"], precision=hi))
    base = jax.nn.silu(jnp.matmul(xn, params["wb"], precision=hi))
    q = base * params["gamma"][0] + params["beta"][0]
    k = base * params["gamma"][1] + params["beta"][1]
    qk = jnp.einsum("bts,bus->btu", q, k, precision=hi)
    kern = jnp.square(jax.nn.relu(qk / math.sqrt(s)))
    y = jnp.matmul(u * jnp.einsum("btu,bue->bte", kern, v, precision=hi),
                   params["wo"], precision=hi)
    if x.shape[-1] == params["wo"].shape[1]:
        y = x * params["res_scale"] + y
    return y


# TODO(synk): DropPath/Dropout (rates 0.0 -> identity), rel_pos_bias and rope
# (disabled by the module's default flags) and the cross-attn branch are not
# implemented.

if __name__ == "__main__":
    key = jax.random.PRNGKey(0)
    k_x, k_p = jax.random.split(key)

    B, T, C = 2, 15, 32        # batch, num_token, in_token_dims (module defaults)
    S = 16                     # self-attention feature dim

    x = jax.random.normal(k_x, (B, T, C), jnp.float32)
    params = init_params(k_p, in_dims=C, out_dims=C, expansion_factor=2, s=S)

    y = gau_block_forward(x, params, s=S, eps=1e-5)
    y = jax.block_until_ready(y)

    y_ref = gau_block_reference(x, params, s=S, eps=1e-5)
    assert y.shape == (B, T, C)
    assert jnp.allclose(y, y_ref, atol=1e-3, rtol=1e-3), (
        float(jnp.max(jnp.abs(y - y_ref))))

    print("KERNEL_OK")
</pallas_src>

<mosaic_0001>
module attributes {stable_mosaic.version = 11 : i64} {
  func.func @_gau_kernel(%arg0: i32, %arg1: memref<1x15x32xf32, #tpu.memory_space<vmem>>, %arg2: memref<32x64xf32, #tpu.memory_space<vmem>>, %arg3: memref<32x64xf32, #tpu.memory_space<vmem>>, %arg4: memref<32x16xf32, #tpu.memory_space<vmem>>, %arg5: memref<2x16xf32, #tpu.memory_space<vmem>>, %arg6: memref<2x16xf32, #tpu.memory_space<vmem>>, %arg7: memref<64x32xf32, #tpu.memory_space<vmem>>, %arg8: memref<1x32xf32, #tpu.memory_space<vmem>>, %arg9: memref<1x15x32xf32, #tpu.memory_space<vmem>>) attributes {dimension_semantics = [#tpu.dimension_semantics<parallel>], iteration_bounds = array<i64: 2>, scalar_prefetch = 0 : i64, scratch_operands = 0 : i64, tpu.core_type = #tpu.core_type<tc>, window_params = [{transform_indices = @transform_0, window_bounds = array<i64: 1, 15, 32>}, {pipeline_mode = #tpu.pipeline_mode<synchronous>, transform_indices = @transform_1, window_bounds = array<i64: 32, 64>}, {pipeline_mode = #tpu.pipeline_mode<synchronous>, transform_indices = @transform_2, window_bounds = array<i64: 32, 64>}, {pipeline_mode = #tpu.pipeline_mode<synchronous>, transform_indices = @transform_3, window_bounds = array<i64: 32, 16>}, {pipeline_mode = #tpu.pipeline_mode<synchronous>, transform_indices = @transform_4, window_bounds = array<i64: 2, 16>}, {pipeline_mode = #tpu.pipeline_mode<synchronous>, transform_indices = @transform_5, window_bounds = array<i64: 2, 16>}, {pipeline_mode = #tpu.pipeline_mode<synchronous>, transform_indices = @transform_6, window_bounds = array<i64: 64, 32>}, {pipeline_mode = #tpu.pipeline_mode<synchronous>, transform_indices = @transform_7, window_bounds = array<i64: 1, 32>}, {transform_indices = @transform_8, window_bounds = array<i64: 1, 15, 32>}]} {
    %c0 = arith.constant 0 : index
    %c0_0 = arith.constant 0 : index
    %c0_1 = arith.constant 0 : index
    %0 = vector.load %arg1[%c0, %c0_0, %c0_1] : memref<1x15x32xf32, #tpu.memory_space<vmem>>, vector<1x15x32xf32>
    %1 = arith.mulf %0, %0 : vector<1x15x32xf32>
    %cst = arith.constant dense<0.000000e+00> : vector<1x15xf32>
    %2 = vector.multi_reduction <add>, %1, %cst [2] : vector<1x15x32xf32> to vector<1x15xf32>
    %3 = vector.shape_cast %2 : vector<1x15xf32> to vector<1x15x1xf32>
    %4 = math.sqrt %3 : vector<1x15x1xf32>
    %cst_2 = arith.constant 0.176776692 : f32
    %5 = vector.broadcast %cst_2 : f32 to vector<1x15x1xf32>
    %6 = arith.mulf %4, %5 : vector<1x15x1xf32>
    %cst_3 = arith.constant 9.99999974E-6 : f32
    %7 = vector.broadcast %cst_3 : f32 to vector<1x15x1xf32>
    %8 = arith.maximumf %6, %7 : vector<1x15x1xf32>
    %cst_4 = arith.constant 1.000000e+00 : f32
    %9 = vector.broadcast %cst_4 : f32 to vector<1x15x1xf32>
    %10 = arith.divf %9, %8 : vector<1x15x1xf32>
    %11 = vector.broadcast %10 : vector<1x15x1xf32> to vector<1x15x32xf32>
    %12 = arith.mulf %0, %11 : vector<1x15x32xf32>
    %c0_5 = arith.constant 0 : index
    %c0_6 = arith.constant 0 : index
    %13 = vector.load %arg2[%c0_5, %c0_6] : memref<32x64xf32, #tpu.memory_space<vmem>>, vector<32x64xf32>
    "tpu.trace_start"() <{level = 10 : i32, message = "btc,ce->bte"}> : () -> ()
    %cst_7 = arith.constant dense<0.000000e+00> : vector<1x15x64xf32>
    %14 = tpu.matmul %12, %13, %cst_7 {dimension_numbers = #tpu.dot_dimension_numbers<[2], [0], [0, 1], [1], [0, 0, 0, 1, 1, 1], [], []>} : vector<1x15x32xf32>, vector<32x64xf32>, vector<1x15x64xf32> -> vector<1x15x64xf32>
    "tpu.trace_stop"() : () -> ()
    %cst_8 = arith.constant 0.000000e+00 : f32
    %15 = vector.broadcast %cst_8 : f32 to vector<1x15x64xf32>
    %16 = arith.subf %15, %14 : vector<1x15x64xf32>
    %17 = math.exp %16 : vector<1x15x64xf32>
    %cst_9 = arith.constant 1.000000e+00 : f32
    %18 = vector.broadcast %cst_9 : f32 to vector<1x15x64xf32>
    %19 = arith.addf %18, %17 : vector<1x15x64xf32>
    %20 = arith.divf %14, %19 : vector<1x15x64xf32>
    %c0_10 = arith.constant 0 : index
    %c0_11 = arith.constant 0 : index
    %21 = vector.load %arg3[%c0_10, %c0_11] : memref<32x64xf32, #tpu.memory_space<vmem>>, vector<32x64xf32>
    "tpu.trace_start"() <{level = 10 : i32, message = "btc,ce->bte"}> : () -> ()
    %cst_12 = arith.constant dense<0.000000e+00> : vector<1x15x64xf32>
    %22 = tpu.matmul %12, %21, %cst_12 {dimension_numbers = #tpu.dot_dimension_numbers<[2], [0], [0, 1], [1], [0, 0, 0, 1, 1, 1], [], []>} : vector<1x15x32xf32>, vector<32x64xf32>, vector<1x15x64xf32> -> vector<1x15x64xf32>
    "tpu.trace_stop"() : () -> ()
    %cst_13 = arith.constant 0.000000e+00 : f32
    %23 = vector.broadcast %cst_13 : f32 to vector<1x15x64xf32>
    %24 = arith.subf %23, %22 : vector<1x15x64xf32>
    %25 = math.exp %24 : vector<1x15x64xf32>
    %cst_14 = arith.constant 1.000000e+00 : f32
    %26 = vector.broadcast %cst_14 : f32 to vector<1x15x64xf32>
    %27 = arith.addf %26, %25 : vector<1x15x64xf32>
    %28 = arith.divf %22, %27 : vector<1x15x64xf32>
    %c0_15 = arith.constant 0 : index
    %c0_16 = arith.constant 0 : index
    %29 = vector.load %arg4[%c0_15, %c0_16] : memref<32x16xf32, #tpu.memory_space<vmem>>, vector<32x16xf32>
    "tpu.trace_start"() <{level = 10 : i32, message = "btc,cs->bts"}> : () -> ()
    %cst_17 = arith.constant dense<0.000000e+00> : vector<1x15x16xf32>
    %30 = tpu.matmul %12, %29, %cst_17 {dimension_numbers = #tpu.dot_dimension_numbers<[2], [0], [0, 1], [1], [0, 0, 0, 1, 1, 1], [], []>} : vector<1x15x32xf32>, vector<32x16xf32>, vector<1x15x16xf32> -> vector<1x15x16xf32>
    "tpu.trace_stop"() : () -> ()
    %cst_18 = arith.constant 0.000000e+00 : f32
    %31 = vector.broadcast %cst_18 : f32 to vector<1x15x16xf32>
    %32 = arith.subf %31, %30 : vector<1x15x16xf32>
    %33 = math.exp %32 : vector<1x15x16xf32>
    %cst_19 = arith.constant 1.000000e+00 : f32
    %34 = vector.broadcast %cst_19 : f32 to vector<1x15x16xf32>
    %35 = arith.addf %34, %33 : vector<1x15x16xf32>
    %36 = arith.divf %30, %35 : vector<1x15x16xf32>
    %c0_20 = arith.constant 0 : index
    %c0_21 = arith.constant 0 : index
    %37 = vector.load %arg5[%c0_20, %c0_21] : memref<2x16xf32, #tpu.memory_space<vmem>>, vector<1x16xf32>
    %38 = vector.shape_cast %37 : vector<1x16xf32> to vector<1x1x16xf32>
    %39 = vector.broadcast %38 : vector<1x1x16xf32> to vector<1x15x16xf32>
    %40 = arith.mulf %36, %39 : vector<1x15x16xf32>
    %c0_22 = arith.constant 0 : index
    %c0_23 = arith.constant 0 : index
    %41 = vector.load %arg6[%c0_22, %c0_23] : memref<2x16xf32, #tpu.memory_space<vmem>>, vector<1x16xf32>
    %42 = vector.shape_cast %41 : vector<1x16xf32> to vector<1x1x16xf32>
    %43 = vector.broadcast %42 : vector<1x1x16xf32> to vector<1x15x16xf32>
    %44 = arith.addf %40, %43 : vector<1x15x16xf32>
    %c1 = arith.constant 1 : index
    %c0_24 = arith.constant 0 : index
    %45 = vector.load %arg5[%c1, %c0_24] : memref<2x16xf32, #tpu.memory_space<vmem>>, vector<1x16xf32>
    %46 = vector.shape_cast %45 : vector<1x16xf32> to vector<1x1x16xf32>
    %47 = vector.broadcast %46 : vector<1x1x16xf32> to vector<1x15x16xf32>
    %48 = arith.mulf %36, %47 : vector<1x15x16xf32>
    %c1_25 = arith.constant 1 : index
    %c0_26 = arith.constant 0 : index
    %49 = vector.load %arg6[%c1_25, %c0_26] : memref<2x16xf32, #tpu.memory_space<vmem>>, vector<1x16xf32>
    %50 = vector.shape_cast %49 : vector<1x16xf32> to vector<1x1x16xf32>
    %51 = vector.broadcast %50 : vector<1x1x16xf32> to vector<1x15x16xf32>
    %52 = arith.addf %48, %51 : vector<1x15x16xf32>
    "tpu.trace_start"() <{level = 10 : i32, message = "bts,bus->btu"}> : () -> ()
    %cst_27 = arith.constant dense<0.000000e+00> : vector<1x15x15xf32>
    %53 = tpu.matmul %44, %52, %cst_27 {dimension_numbers = #tpu.dot_dimension_numbers<[2], [2], [1], [1], [0, 0, 0, 1, 1, 1], [0], [0]>} : vector<1x15x16xf32>, vector<1x15x16xf32>, vector<1x15x15xf32> -> vector<1x15x15xf32>
    "tpu.trace_stop"() : () -> ()
    %cst_28 = arith.constant 2.500000e-01 : f32
    %54 = vector.broadcast %cst_28 : f32 to vector<1x15x15xf32>
    %55 = arith.mulf %53, %54 : vector<1x15x15xf32>
    %cst_29 = arith.constant 0.000000e+00 : f32
    %56 = vector.broadcast %cst_29 : f32 to vector<1x15x15xf32>
    %57 = arith.maximumf %55, %56 : vector<1x15x15xf32>
    %58 = arith.mulf %57, %57 : vector<1x15x15xf32>
    "tpu.trace_start"() <{level = 10 : i32, message = "btu,bue->bte"}> : () -> ()
    %cst_30 = arith.constant dense<0.000000e+00> : vector<1x15x64xf32>
    %59 = tpu.matmul %58, %28, %cst_30 {dimension_numbers = #tpu.dot_dimension_numbers<[2], [1], [1], [2], [0, 0, 0, 1, 1, 2], [0], [0]>} : vector<1x15x15xf32>, vector<1x15x64xf32>, vector<1x15x64xf32> -> vector<1x15x64xf32>
    "tpu.trace_stop"() : () -> ()
    %60 = arith.mulf %20, %59 : vector<1x15x64xf32>
    %c0_31 = arith.constant 0 : index
    %c0_32 = arith.constant 0 : index
    %61 = vector.load %arg7[%c0_31, %c0_32] : memref<64x32xf32, #tpu.memory_space<vmem>>, vector<64x32xf32>
    "tpu.trace_start"() <{level = 10 : i32, message = "bte,eo->bto"}> : () -> ()
    %cst_33 = arith.constant dense<0.000000e+00> : vector<1x15x32xf32>
    %62 = tpu.matmul %60, %61, %cst_33 {dimension_numbers = #tpu.dot_dimension_numbers<[2], [0], [0, 1], [1], [0, 0, 0, 1, 1, 1], [], []>} : vector<1x15x64xf32>, vector<64x32xf32>, vector<1x15x32xf32> -> vector<1x15x32xf32>
    "tpu.trace_stop"() : () -> ()
    %c0_34 = arith.constant 0 : index
    %c0_35 = arith.constant 0 : index
    %63 = vector.load %arg8[%c0_34, %c0_35] : memref<1x32xf32, #tpu.memory_space<vmem>>, vector<1x32xf32>
    %64 = vector.shape_cast %63 : vector<1x32xf32> to vector<1x1x32xf32>
    %65 = vector.broadcast %64 : vector<1x1x32xf32> to vector<1x15x32xf32>
    %66 = arith.mulf %0, %65 : vector<1x15x32xf32>
    %67 = arith.addf %66, %62 : vector<1x15x32xf32>
    %c0_36 = arith.constant 0 : index
    %c0_37 = arith.constant 0 : index
    %c0_38 = arith.constant 0 : index
    %68 = vector.load %arg9[%c0_36, %c0_37, %c0_38] : memref<1x15x32xf32, #tpu.memory_space<vmem>>, vector<1x15x32xf32>
    tpu.vector_store %arg9[%c0_36, %c0_37, %c0_38], %67 {strides = array<i32>} : memref<1x15x32xf32, #tpu.memory_space<vmem>>, vector<1x15x32xf32>,
    return
  }
  func.func @transform_0(%arg0: i32) -> (i32, i32, i32) {
    %c0_i32 = arith.constant 0 : i32
    %c0_i32_0 = arith.constant 0 : i32
    %c0_i32_1 = arith.constant 0 : i32
    return %arg0, %c0_i32, %c0_i32_0 : i32, i32, i32
  }
  func.func @transform_1(%arg0: i32) -> (i32, i32) {
    %c0_i32 = arith.constant 0 : i32
    %c0_i32_0 = arith.constant 0 : i32
    %c0_i32_1 = arith.constant 0 : i32
    return %c0_i32, %c0_i32_0 : i32, i32
  }
  func.func @transform_2(%arg0: i32) -> (i32, i32) {
    %c0_i32 = arith.constant 0 : i32
    %c0_i32_0 = arith.constant 0 : i32
    %c0_i32_1 = arith.constant 0 : i32
    return %c0_i32, %c0_i32_0 : i32, i32
  }
  func.func @transform_3(%arg0: i32) -> (i32, i32) {
    %c0_i32 = arith.constant 0 : i32
    %c0_i32_0 = arith.constant 0 : i32
    %c0_i32_1 = arith.constant 0 : i32
    return %c0_i32, %c0_i32_0 : i32, i32
  }
  func.func @transform_4(%arg0: i32) -> (i32, i32) {
    %c0_i32 = arith.constant 0 : i32
    %c0_i32_0 = arith.constant 0 : i32
    %c0_i32_1 = arith.constant 0 : i32
    return %c0_i32, %c0_i32_0 : i32, i32
  }
  func.func @transform_5(%arg0: i32) -> (i32, i32) {
    %c0_i32 = arith.constant 0 : i32
    %c0_i32_0 = arith.constant 0 : i32
    %c0_i32_1 = arith.constant 0 : i32
    return %c0_i32, %c0_i32_0 : i32, i32
  }
  func.func @transform_6(%arg0: i32) -> (i32, i32) {
    %c0_i32 = arith.constant 0 : i32
    %c0_i32_0 = arith.constant 0 : i32
    %c0_i32_1 = arith.constant 0 : i32
    return %c0_i32, %c0_i32_0 : i32, i32
  }
  func.func @transform_7(%arg0: i32) -> (i32, i32) {
    %c0_i32 = arith.constant 0 : i32
    %c0_i32_0 = arith.constant 0 : i32
    %c0_i32_1 = arith.constant 0 : i32
    return %c0_i32, %c0_i32_0 : i32, i32
  }
  func.func @transform_8(%arg0: i32) -> (i32, i32, i32) {
    %c0_i32 = arith.constant 0 : i32
    %c0_i32_0 = arith.constant 0 : i32
    %c0_i32_1 = arith.constant 0 : i32
    return %arg0, %c0_i32, %c0_i32_0 : i32, i32, i32
  }
}

</mosaic_0001>

<llo_original>
// kernel: tpu_custom_call.1
$region0: #{tpu_custom_call.1}
  #allocation0 [shape = 'u32[]', space=smem, size = 0x4, offset = 0x4, fixed_abs, tag = 'smem constant byte address 0x4 - core index']
  #allocation1 [shape = 'u32[144,128]{1,0:T(1,128)}', space=vmem, size = 0x12000, scoped, tag = 'internal scratch']
  %s0 = inlined_call_operand.vmem [shape: f32[2,15,32], index: 0, kind: input, shape index: {}]
  %s1 = inlined_call_operand.vmem [shape: f32[32,64], index: 1, kind: input, shape index: {}]
  %s2 = inlined_call_operand.vmem [shape: f32[32,64], index: 2, kind: input, shape index: {}]
  %s3 = inlined_call_operand.vmem [shape: f32[32,16], index: 3, kind: input, shape index: {}]
  %s4 = inlined_call_operand.vmem [shape: f32[2,16], index: 4, kind: input, shape index: {}]
  %s5 = inlined_call_operand.vmem [shape: f32[2,16], index: 5, kind: input, shape index: {}]
  %s6 = inlined_call_operand.vmem [shape: f32[64,32], index: 6, kind: input, shape index: {}]
  %s7 = inlined_call_operand.vmem [shape: f32[1,32], index: 7, kind: input, shape index: {}]
  %s8 = inlined_call_operand.vmem [shape: f32[2,15,32], index: 8, kind: output, shape index: {}]
  %s9 = sld [smem:[#allocation0]]
  $region65: #{tpu_custom_call.1} parent=0
    _
  %s11 = ssub.s32 1, %s9
  %s12 = scalar_select 0, %s11, %s9
  loop: start=0, step=1, limit=4
  $region2: #{tpu_custom_call.1} parent=0 // loop_pre_header
    _
  $region3: #{tpu_custom_call.1} parent=0 // loop_header
    %s14 = sphi 0, %s18
    %p15 = scmp.ge.s32.totalorder %s14, 4
    %s24 = sphi 0, %s26
    %s27 = sphi 0, %s24
    %s28 = sphi 0, %s27
    %s44 = sphi 0, %s28
    %s48 = sphi 0, %s48
    %s50 = sphi 0, %s48
    %s51 = sphi 0, %s50
    %s65 = sphi 0, %s51
    %s69 = sphi 0, %s69
    %s71 = sphi 0, %s69
    %s72 = sphi 0, %s71
    %s86 = sphi 0, %s72
    %s90 = sphi 0, %s90
    %s92 = sphi 0, %s90
    %s93 = sphi 0, %s92
    %s107 = sphi 0, %s93
    %s111 = sphi 0, %s111
    %s113 = sphi 0, %s111
    %s114 = sphi 0, %s113
    %s128 = sphi 0, %s114
    %s132 = sphi 0, %s132
    %s134 = sphi 0, %s132
    %s135 = sphi 0, %s134
    %s149 = sphi 0, %s135
    %s153 = sphi 0, %s153
    %s155 = sphi 0, %s153
    %s156 = sphi 0, %s155
    %s170 = sphi 0, %s156
    %s174 = sphi 0, %s174
    %s176 = sphi 0, %s174
    %s177 = sphi 0, %s176
    %s191 = sphi 0, %s177
    %s197 = sphi 0, %s199
    %s200 = sphi 0, %s197
    %s201 = sphi 0, %s200
    %s217 = sphi 0, %s201
  $region4: #{tpu_custom_call.1} parent=0 // loop_header_branch
    %17 = sbr.rel (%p15) target = $region8
  $region5: #{tpu_custom_call.1} parent=0 // loop_body
    %s19 = ssub.s32 %s14, 1
    %s20 = ssub.s32 %s14, 2
    %s21 = sadd.s32 %s14, 1
    %s22 = ssub.s32 %s14, %s21
    %p23 = scmp.eq.s32.totalorder %s22, 0
    %s25 = sadd.s32 %s24, 1
    %s26 = scalar_select %p23, %s24, %s25
    %p29 = pneg %p23
    %p30 = scmp.eq.s32.totalorder %s14, 1
    %p31 = por %p29, %p30
    %p32 = scmp.ne.s32.totalorder %s24, %s27
    %p33 = scmp.eq.s32.totalorder %s14, 0
    %p34 = por %p32, %p33
    %p35 = scmp.ne.s32.totalorder %s24, %s27
    %p36 = scmp.eq.s32.totalorder %s19, 1
    %p37 = por %p35, %p36
    %p38 = scmp.ne.s32.totalorder %s27, %s28
    %p39 = scmp.eq.s32.totalorder %s19, 0
    %p40 = por %p38, %p39
    %p41 = scmp.ne.s32.totalorder %s27, %s28
    %p42 = scmp.eq.s32.totalorder %s20, 1
    %p43 = por %p41, %p42
    %p45 = scmp.ne.s32.totalorder %s28, %s44
    %p46 = scmp.eq.s32.totalorder %s20, 0
    %p47 = por %p45, %p46
    %s49 = sadd.s32 %s48, 1
    %p52 = scmp.eq.s32.totalorder %s14, 1
    %p53 = scmp.ne.s32.totalorder %s48, %s50
    %p54 = scmp.eq.s32.totalorder %s14, 0
    %p55 = por %p53, %p54
    %p56 = scmp.ne.s32.totalorder %s48, %s50
    %p57 = scmp.eq.s32.totalorder %s19, 1
    %p58 = por %p56, %p57
    %p59 = scmp.ne.s32.totalorder %s50, %s51
    %p60 = scmp.eq.s32.totalorder %s19, 0
    %p61 = por %p59, %p60
    %p62 = scmp.ne.s32.totalorder %s50, %s51
    %p63 = scmp.eq.s32.totalorder %s20, 1
    %p64 = por %p62, %p63
    %p66 = scmp.ne.s32.totalorder %s51, %s65
    %p67 = scmp.eq.s32.totalorder %s20, 0
    %p68 = por %p66, %p67
    %s70 = sadd.s32 %s69, 1
    %p73 = scmp.eq.s32.totalorder %s14, 1
    %p74 = scmp.ne.s32.totalorder %s69, %s71
    %p75 = scmp.eq.s32.totalorder %s14, 0
    %p76 = por %p74, %p75
    %p77 = scmp.ne.s32.totalorder %s69, %s71
    %p78 = scmp.eq.s32.totalorder %s19, 1
    %p79 = por %p77, %p78
    %p80 = scmp.ne.s32.totalorder %s71, %s72
    %p81 = scmp.eq.s32.totalorder %s19, 0
    %p82 = por %p80, %p81
    %p83 = scmp.ne.s32.totalorder %s71, %s72
    %p84 = scmp.eq.s32.totalorder %s20, 1
    %p85 = por %p83, %p84
    %p87 = scmp.ne.s32.totalorder %s72, %s86
    %p88 = scmp.eq.s32.totalorder %s20, 0
    %p89 = por %p87, %p88
    %s91 = sadd.s32 %s90, 1
    %p94 = scmp.eq.s32.totalorder %s14, 1
    %p95 = scmp.ne.s32.totalorder %s90, %s92
    %p96 = scmp.eq.s32.totalorder %s14, 0
    %p97 = por %p95, %p96
    %p98 = scmp.ne.s32.totalorder %s90, %s92
    %p99 = scmp.eq.s32.totalorder %s19, 1
    %p100 = por %p98, %p99
    %p101 = scmp.ne.s32.totalorder %s92, %s93
    %p102 = scmp.eq.s32.totalorder %s19, 0
    %p103 = por %p101, %p102
    %p104 = scmp.ne.s32.totalorder %s92, %s93
    %p105 = scmp.eq.s32.totalorder %s20, 1
    %p106 = por %p104, %p105
    %p108 = scmp.ne.s32.totalorder %s93, %s107
    %p109 = scmp.eq.s32.totalorder %s20, 0
    %p110 = por %p108, %p109
    %s112 = sadd.s32 %s111, 1
    %p115 = scmp.eq.s32.totalorder %s14, 1
    %p116 = scmp.ne.s32.totalorder %s111, %s113
    %p117 = scmp.eq.s32.totalorder %s14, 0
    %p118 = por %p116, %p117
    %p119 = scmp.ne.s32.totalorder %s111, %s113
    %p120 = scmp.eq.s32.totalorder %s19, 1
    %p121 = por %p119, %p120
    %p122 = scmp.ne.s32.totalorder %s113, %s114
    %p123 = scmp.eq.s32.totalorder %s19, 0
    %p124 = por %p122, %p123
    %p125 = scmp.ne.s32.totalorder %s113, %s114
    %p126 = scmp.eq.s32.totalorder %s20, 1
    %p127 = por %p125, %p126
    %p129 = scmp.ne.s32.totalorder %s114, %s128
    %p130 = scmp.eq.s32.totalorder %s20, 0
    %p131 = por %p129, %p130
    %s133 = sadd.s32 %s132, 1
    %p136 = scmp.eq.s32.totalorder %s14, 1
    %p137 = scmp.ne.s32.totalorder %s132, %s134
    %p138 = scmp.eq.s32.totalorder %s14, 0
    %p139 = por %p137, %p138
    %p140 = scmp.ne.s32.totalorder %s132, %s134
    %p141 = scmp.eq.s32.totalorder %s19, 1
    %p142 = por %p140, %p141
    %p143 = scmp.ne.s32.totalorder %s134, %s135
    %p144 = scmp.eq.s32.totalorder %s19, 0
    %p145 = por %p143, %p144
    %p146 = scmp.ne.s32.totalorder %s134, %s135
    %p147 = scmp.eq.s32.totalorder %s20, 1
    %p148 = por %p146, %p147
    %p150 = scmp.ne.s32.totalorder %s135, %s149
    %p151 = scmp.eq.s32.totalorder %s20, 0
    %p152 = por %p150, %p151
    %s154 = sadd.s32 %s153, 1
    %p157 = scmp.eq.s32.totalorder %s14, 1
    %p158 = scmp.ne.s32.totalorder %s153, %s155
    %p159 = scmp.eq.s32.totalorder %s14, 0
    %p160 = por %p158, %p159
    %p161 = scmp.ne.s32.totalorder %s153, %s155
    %p162 = scmp.eq.s32.totalorder %s19, 1
    %p163 = por %p161, %p162
    %p164 = scmp.ne.s32.totalorder %s155, %s156
    %p165 = scmp.eq.s32.totalorder %s19, 0
    %p166 = por %p164, %p165
    %p167 = scmp.ne.s32.totalorder %s155, %s156
    %p168 = scmp.eq.s32.totalorder %s20, 1
    %p169 = por %p167, %p168
    %p171 = scmp.ne.s32.totalorder %s156, %s170
    %p172 = scmp.eq.s32.totalorder %s20, 0
    %p173 = por %p171, %p172
    %s175 = sadd.s32 %s174, 1
    %p178 = scmp.eq.s32.totalorder %s14, 1
    %p179 = scmp.ne.s32.totalorder %s174, %s176
    %p180 = scmp.eq.s32.totalorder %s14, 0
    %p181 = por %p179, %p180
    %p182 = scmp.ne.s32.totalorder %s174, %s176
    %p183 = scmp.eq.s32.totalorder %s19, 1
    %p184 = por %p182, %p183
    %p185 = scmp.ne.s32.totalorder %s176, %s177
    %p186 = scmp.eq.s32.totalorder %s19, 0
    %p187 = por %p185, %p186
    %p188 = scmp.ne.s32.totalorder %s176, %s177
    %p189 = scmp.eq.s32.totalorder %s20, 1
    %p190 = por %p188, %p189
    %p192 = scmp.ne.s32.totalorder %s177, %s191
    %p193 = scmp.eq.s32.totalorder %s20, 0
    %p194 = por %p192, %p193
    %s195 = ssub.s32 %s14, %s21
    %p196 = scmp.eq.s32.totalorder %s195, 0
    %s198 = sadd.s32 %s197, 1
    %s199 = scalar_select %p196, %s197, %s198
    %p202 = pneg %p196
    %p203 = scmp.eq.s32.totalorder %s14, 1
    %p204 = por %p202, %p203
    %p205 = scmp.ne.s32.totalorder %s197, %s200
    %p206 = scmp.eq.s32.totalorder %s14, 0
    %p207 = por %p205, %p206
    %p208 = scmp.ne.s32.totalorder %s197, %s200
    %p209 = scmp.eq.s32.totalorder %s19, 1
    %p210 = por %p208, %p209
    %p211 = scmp.ne.s32.totalorder %s200, %s201
    %p212 = scmp.eq.s32.totalorder %s19, 0
    %p213 = por %p211, %p212
    %p214 = scmp.ne.s32.totalorder %s200, %s201
    %p215 = scmp.eq.s32.totalorder %s20, 1
    %p216 = por %p214, %p215
    %p218 = scmp.ne.s32.totalorder %s201, %s217
    %p219 = scmp.eq.s32.totalorder %s20, 0
    %p220 = por %p218, %p219
    %p221 = scmp.le.s32.totalorder 1, %s14
    %p222 = scmp.lt.s32.totalorder %s14, 3
    %p223 = pnand %p221, %p222
    %p224 = pneg %p223
    // Predicated region
    $region9: #{tpu_custom_call.1} parent=5 // pred_check
      _
    $region10: #{tpu_custom_call.1} parent=5 // pred_check_branch
      %226 = sbr.rel (%p223) target = $region12
    $region11: #{tpu_custom_call.1} parent=5 // pred_region
      %s227 = ssub.s32 %s14, 1
      // Predicated region
      $region13: #{tpu_custom_call.1} parent=11 // pred_check
        %p228 = pneg %p61
      $region14: #{tpu_custom_call.1} parent=11 // pred_check_branch
        %230 = sbr.rel (%p228) target = $region16
      $region15: #{tpu_custom_call.1} parent=11 // pred_region
        _
      $region16: #{tpu_custom_call.1} parent=11 // pred_fallthru
        _
      // Predicated region
      $region17: #{tpu_custom_call.1} parent=11 // pred_check
        %p231 = pneg %p82
      $region18: #{tpu_custom_call.1} parent=11 // pred_check_branch
        %233 = sbr.rel (%p231) target = $region20
      $region19: #{tpu_custom_call.1} parent=11 // pred_region
        _
      $region20: #{tpu_custom_call.1} parent=11 // pred_fallthru
        _
      // Predicated region
      $region21: #{tpu_custom_call.1} parent=11 // pred_check
        %p234 = pneg %p103
      $region22: #{tpu_custom_call.1} parent=11 // pred_check_branch
        %236 = sbr.rel (%p234) target = $region24
      $region23: #{tpu_custom_call.1} parent=11 // pred_region
        _
      $region24: #{tpu_custom_call.1} parent=11 // pred_fallthru
        _
      // Predicated region
      $region25: #{tpu_custom_call.1} parent=11 // pred_check
        %p237 = pneg %p124
      $region26: #{tpu_custom_call.1} parent=11 // pred_check_branch
        %239 = sbr.rel (%p237) target = $region28
      $region27: #{tpu_custom_call.1} parent=11 // pred_region
        _
      $region28: #{tpu_custom_call.1} parent=11 // pred_fallthru
        _
      // Predicated region
      $region29: #{tpu_custom_call.1} parent=11 // pred_check
        %p240 = pneg %p145
      $region30: #{tpu_custom_call.1} parent=11 // pred_check_branch
        %242 = sbr.rel (%p240) target = $region32
      $region31: #{tpu_custom_call.1} parent=11 // pred_region
        _
      $region32: #{tpu_custom_call.1} parent=11 // pred_fallthru
        _
      // Predicated region
      $region33: #{tpu_custom_call.1} parent=11 // pred_check
        %p243 = pneg %p166
      $region34: #{tpu_custom_call.1} parent=11 // pred_check_branch
        %245 = sbr.rel (%p243) target = $region36
      $region35: #{tpu_custom_call.1} parent=11 // pred_region
        _
      $region36: #{tpu_custom_call.1} parent=11 // pred_fallthru
        _
      // Predicated region
      $region37: #{tpu_custom_call.1} parent=11 // pred_check
        %p246 = pneg %p187
      $region38: #{tpu_custom_call.1} parent=11 // pred_check_branch
        %248 = sbr.rel (%p246) target = $region40
      $region39: #{tpu_custom_call.1} parent=11 // pred_region
        _
      $region40: #{tpu_custom_call.1} parent=11 // pred_fallthru
        _
    $region12: #{tpu_custom_call.1} parent=5 // pred_fallthru
      _
    %p249 = scmp.lt.s32.totalorder %s14, 2
    // Predicated region
    $region41: #{tpu_custom_call.1} parent=5 // pred_check
      %p250 = pneg %p249
    $region42: #{tpu_custom_call.1} parent=5 // pred_check_branch
      %252 = sbr.rel (%p250) target = $region44
    $region43: #{tpu_custom_call.1} parent=5 // pred_region
      // Predicated region
      $region45: #{tpu_custom_call.1} parent=43 // pred_check
        %p253 = pneg %p34
      $region46: #{tpu_custom_call.1} parent=43 // pred_check_branch
        %255 = sbr.rel (%p253) target = $region48
      $region47: #{tpu_custom_call.1} parent=43 // pred_region
        %p256 = scmp.lt.s32.totalorder %s14, 1
        %s257 = scalar_select %p256, %s14, 1
        %s258 = smul.addr %s257, 2
        %s259 = smul.addr %s258, 8
        %s260 = scalar_lea.vmem %s0, %s259
      $region48: #{tpu_custom_call.1} parent=43 // pred_fallthru
        _
    $region44: #{tpu_custom_call.1} parent=5 // pred_fallthru
      _
    %p261 = scmp.le.s32.totalorder 1, %s14
    %p262 = scmp.lt.s32.totalorder %s14, 3
    %p263 = pnand %p261, %p262
    %p264 = pneg %p263
    // Predicated region
    $region49: #{tpu_custom_call.1} parent=5 // pred_check
      _
    $region50: #{tpu_custom_call.1} parent=5 // pred_check_branch
      %266 = sbr.rel (%p263) target = $region52
    $region51: #{tpu_custom_call.1} parent=5 // pred_region
      %s267 = ssub.s32 %s14, 1
      %p268 = scmp.lt.s32.totalorder %s19, 1
      %s269 = scalar_select %p268, %s19, 1
      %s270 = smul.addr %s269, 2
      %s271 = smul.addr %s270, 8
      %s272 = scalar_lea.vmem %s0, %s271
      %p273 = pneg %p40
      %p274 = pneg %p37
      %p275 = pneg %p61
      %p276 = pneg %p58
      %p277 = pneg %p82
      %p278 = pneg %p79
      %p279 = pneg %p103
      %p280 = pneg %p100
      %p281 = pneg %p124
      %p282 = pneg %p121
      %p283 = pneg %p145
      %p284 = pneg %p142
      %p285 = pneg %p166
      %p286 = pneg %p163
      %p287 = pneg %p187
      %p288 = pneg %p184
      %p289 = pneg %p213
      %p290 = pneg %p210
      %p291 = scmp.lt.s32.totalorder %s19, 1
      %s292 = scalar_select %p291, %s19, 1
      %s293 = smul.addr %s292, 2
      %s294 = smul.addr %s293, 8
      %s295 = scalar_lea.vmem %s8, %s294
      %p296 = scmp.lt.s32.totalorder %s19, 1
      %s297 = scalar_select %p296, %s19, 1
      %s298 = smul.addr %s297, 2
      %s299 = smul.addr %s298, 8
      %s300 = scalar_lea.vmem %s0, %s299
      %p301 = scmp.lt.s32.totalorder %s19, 1
      %s302 = scalar_select %p301, %s19, 1
      %s303 = smul.addr %s302, 2
      %s304 = smul.addr %s303, 8
      %s305 = scalar_lea.vmem %s8, %s304
      %v306 = vld [vmem:[%s300] sm:$0xff]
      %v307 = vld [vmem:[%s300 + $0x8] sm:$0x7f]
      %v308 = vmul.f32 %v306, %v306
      %v309 = vmul.f32 %v307, %v307
      %vm310 = vcmask 261120
      %v311 = vsel %vm310, %v308, 0.0
      %312 = vadd.xlane.f32.xlu0 %v311
      %v313 = vpop.xlane.xlu0 %312
      %vm314 = vcmask 260096
      %v315 = vsel %vm314, %v309, 0.0
      %316 = vadd.xlane.f32.xlu0 %v315
      %v317 = vpop.xlane.xlu0 %316
      %v318 = vrsqrt.pop %v313
      %v319 = vmul.f32 %v313, %v318
      %vm320 = vcmp.eq.f32.partialorder %v313, inf
      %v321 = vsel %vm320, %v313, %v319
      %vm322 = vcmp.eq.f32.partialorder %v313, 0.0
      %v323 = vand.u32 %v313, 2147483648
      %v324 = vsel %vm322, %v323, %v321
      %v325 = vrsqrt.pop %v317
      %v326 = vmul.f32 %v317, %v325
      %vm327 = vcmp.eq.f32.partialorder %v317, inf
      %v328 = vsel %vm327, %v317, %v326
      %vm329 = vcmp.eq.f32.partialorder %v317, 0.0
      %v330 = vand.u32 %v317, 2147483648
      %v331 = vsel %vm329, %v330, %v328
      %v332 = vmul.f32 %v324, 0.17677669
      %v333 = vmul.f32 %v331, 0.17677669
      %v334 = vmax.f32 %v332, 1e-05
      %v335 = vmax.f32 %v333, 1e-05
      %v336 = vrcp.pop %v334
      %v337 = vmul.f32 1.0, %v336
      %v338 = vrcp.pop %v335
      %v339 = vmul.f32 1.0, %v338
      %v340 = vmul.f32 %v306, %v337
      %v341 = vmul.f32 %v307, %v339
      %v342 = vld [vmem:[%s1] sm:$0xff]
      %v343 = vld [vmem:[%s1 + $0x8] sm:$0xff]
      %v344 = vld [vmem:[%s1 + $0x10] sm:$0xff]
      %v345 = vld [vmem:[%s1 + $0x18] sm:$0xff]
      %v347 = vsel %vm310, %v340, 0
      %v350 = vsel %vm310, %v341, 0
      %352 = vmatprep.subr.mxu0 0.0
      %353 = vmatpush1.msra.mxu0 %v342
      %354 = vmatprep.subr.mxu0 0.0
      %355 = vmatpush1.msra.mxu0 %v343
      %356 = vmatprep.subr.mxu0 0.0
      %357 = vmatpush1.msra.mxu0 %v344
      %358 = vmatprep.subr.mxu0 0.0
      %359 = vmatpush1.msra.mxu0 %v345
      %360 = vmatprep.subr.mxu0 0.0
      %361 = vmatpush1.msra.mxu0 0.0
      %362 = vmatprep.subr.mxu0 0.0
      %363 = vmatpush1.msra.mxu0 0.0
      %364 = vmatprep.subr.mxu0 0.0
      %365 = vmatpush1.msra.mxu0 0.0
      %366 = vmatprep.subr.mxu0 0.0
      %367 = vmatpush1.msra.mxu0 0.0
      %368 = vmatprep.subr.mxu0 0.0
      %369 = vmatpush1.msra.mxu0 0.0
      %370 = vmatprep.subr.mxu0 0.0
      %371 = vmatpush1.msra.mxu0 0.0
      %372 = vmatprep.subr.mxu0 0.0
      %373 = vmatpush1.msra.mxu0 0.0
      %374 = vmatprep.subr.mxu0 0.0
      %375 = vmatpush1.msra.mxu0 0.0
      %376 = vmatprep.subr.mxu0 0.0
      %377 = vmatpush1.msra.mxu0 0.0
      %378 = vmatprep.subr.mxu0 0.0
      %379 = vmatpush1.msra.mxu0 0.0
      %380 = vmatprep.subr.mxu0 0.0
      %381 = vmatpush1.msra.mxu0 0.0
      %382 = vmatprep.subr.mxu0 0.0
      %383 = vmatpush1.msra.mxu0 0.0
      %384 = vmatprep.subr.mxu0 0.0
      %385 = vmatpush1.msra.mxu0 0.0
      %386 = vmatprep.subr.mxu0 0.0
      %387 = vmatpush1.msra.mxu0 0.0
      %388 = vmatprep.subr.mxu0 0.0
      %389 = vmatpush1.msra.mxu0 0.0
      %390 = vmatprep.subr.mxu0 0.0
      %391 = vmatpush1.msra.mxu0 0.0
      %392 = vmatprep.subr.mxu0 0.0
      %393 = vmatpush1.msra.mxu0 0.0
      %394 = vmatprep.subr.mxu0 0.0
      %395 = vmatpush1.msra.mxu0 0.0
      %396 = vmatprep.subr.mxu0 0.0
      %397 = vmatpush1.msra.mxu0 0.0
      %398 = vmatprep.subr.mxu0 0.0
      %399 = vmatpush1.msra.mxu0 0.0
      %400 = vmatprep.subr.mxu0 0.0
      %401 = vmatpush1.msra.mxu0 0.0
      %402 = vmatprep.subr.mxu0 0.0
      %403 = vmatpush1.msra.mxu0 0.0
      %404 = vmatprep.subr.mxu0 0.0
      %405 = vmatpush1.msra.mxu0 0.0
      %406 = vmatprep.subr.mxu0 0.0
      %407 = vmatpush1.msra.mxu0 0.0
      %408 = vmatprep.subr.mxu0 0.0
      %409 = vmatpush1.msra.mxu0 0.0
      %410 = vmatprep.subr.mxu0 0.0
      %411 = vmatpush1.msra.mxu0 0.0
      %412 = vmatprep.subr.mxu0 0.0
      %413 = vmatpush1.msra.mxu0 0.0
      %414 = vmatprep.subr.mxu0 0.0
      %415 = vmatpush1.msra.mxu0 0.0
      %416 = vmatprep.mubr.f32.mxu0 0.0
      %417 = vmatmul.mubr.f32.gmra.mrb[0].mxu0 %v347
      %v418 = vpop.f32.mrb[0].mxu0
      %v419 = vadd.f32 0.0, %v418
      %v420 = vpop.f32.mrb[0].mxu0
      %421 = vmatprep.mubr.f32.mxu0 0.0
      %422 = vmatmul.mubr.f32.gmra.mrb[0].mxu0 %v350
      %v423 = vpop.f32.mrb[0].mxu0
      %v424 = vadd.f32 0.0, %v423
      %v425 = vpop.f32.mrb[0].mxu0
      %426 = vdwg.mxu0
      %v427 = vsub.f32 0.0, %v419
      %v428 = vsub.f32 0.0, %v424
      %v429 = vmul.f32 %v427, 1.442695
      %v430 = vpow.pop %v429
      %v431 = vmul.f32 %v428, 1.442695
      %v432 = vpow.pop %v431
      %v433 = vadd.f32 %v430, 1.0
      %v434 = vadd.f32 %v432, 1.0
      %v435 = vrcp.pop %v433
      %v436 = vmul.f32 %v419, %v435
      %v437 = vrcp.pop %v434
      %v438 = vmul.f32 %v424, %v437
      %v439 = vld [vmem:[%s2] sm:$0xff]
      %v440 = vld [vmem:[%s2 + $0x8] sm:$0xff]
      %v441 = vld [vmem:[%s2 + $0x10] sm:$0xff]
      %v442 = vld [vmem:[%s2 + $0x18] sm:$0xff]
      %443 = vmatprep.subr.mxu0 0.0
      %444 = vmatpush1.msra.mxu0 %v439
      %445 = vmatprep.subr.mxu0 0.0
      %446 = vmatpush1.msra.mxu0 %v440
      %447 = vmatprep.subr.mxu0 0.0
      %448 = vmatpush1.msra.mxu0 %v441
      %449 = vmatprep.subr.mxu0 0.0
      %450 = vmatpush1.msra.mxu0 %v442
      %451 = vmatprep.subr.mxu0 0.0
      %452 = vmatpush1.msra.mxu0 0.0
      %453 = vmatprep.subr.mxu0 0.0
      %454 = vmatpush1.msra.mxu0 0.0
      %455 = vmatprep.subr.mxu0 0.0
      %456 = vmatpush1.msra.mxu0 0.0
      %457 = vmatprep.subr.mxu0 0.0
      %458 = vmatpush1.msra.mxu0 0.0
      %459 = vmatprep.subr.mxu0 0.0
      %460 = vmatpush1.msra.mxu0 0.0
      %461 = vmatprep.subr.mxu0 0.0
      %462 = vmatpush1.msra.mxu0 0.0
      %463 = vmatprep.subr.mxu0 0.0
      %464 = vmatpush1.msra.mxu0 0.0
      %465 = vmatprep.subr.mxu0 0.0
      %466 = vmatpush1.msra.mxu0 0.0
      %467 = vmatprep.subr.mxu0 0.0
      %468 = vmatpush1.msra.mxu0 0.0
      %469 = vmatprep.subr.mxu0 0.0
      %470 = vmatpush1.msra.mxu0 0.0
      %471 = vmatprep.subr.mxu0 0.0
      %472 = vmatpush1.msra.mxu0 0.0
      %473 = vmatprep.subr.mxu0 0.0
      %474 = vmatpush1.msra.mxu0 0.0
      %475 = vmatprep.subr.mxu0 0.0
      %476 = vmatpush1.msra.mxu0 0.0
      %477 = vmatprep.subr.mxu0 0.0
      %478 = vmatpush1.msra.mxu0 0.0
      %479 = vmatprep.subr.mxu0 0.0
      %480 = vmatpush1.msra.mxu0 0.0
      %481 = vmatprep.subr.mxu0 0.0
      %482 = vmatpush1.msra.mxu0 0.0
      %483 = vmatprep.subr.mxu0 0.0
      %484 = vmatpush1.msra.mxu0 0.0
      %485 = vmatprep.subr.mxu0 0.0
      %486 = vmatpush1.msra.mxu0 0.0
      %487 = vmatprep.subr.mxu0 0.0
      %488 = vmatpush1.msra.mxu0 0.0
      %489 = vmatprep.subr.mxu0 0.0
      %490 = vmatpush1.msra.mxu0 0.0
      %491 = vmatprep.subr.mxu0 0.0
      %492 = vmatpush1.msra.mxu0 0.0
      %493 = vmatprep.subr.mxu0 0.0
      %494 = vmatpush1.msra.mxu0 0.0
      %495 = vmatprep.subr.mxu0 0.0
      %496 = vmatpush1.msra.mxu0 0.0
      %497 = vmatprep.subr.mxu0 0.0
      %498 = vmatpush1.msra.mxu0 0.0
      %499 = vmatprep.subr.mxu0 0.0
      %500 = vmatpush1.msra.mxu0 0.0
      %501 = vmatprep.subr.mxu0 0.0
      %502 = vmatpush1.msra.mxu0 0.0
      %503 = vmatprep.subr.mxu0 0.0
      %504 = vmatpush1.msra.mxu0 0.0
      %505 = vmatprep.subr.mxu0 0.0
      %506 = vmatpush1.msra.mxu0 0.0
      %507 = vmatprep.mubr.f32.mxu0 0.0
      %508 = vmatmul.mubr.f32.gmra.mrb[0].mxu0 %v347
      %v509 = vpop.f32.mrb[0].mxu0
      %v510 = vadd.f32 0.0, %v509
      %v511 = vpop.f32.mrb[0].mxu0
      %512 = vmatprep.mubr.f32.mxu0 0.0
      %513 = vmatmul.mubr.f32.gmra.mrb[0].mxu0 %v350
      %v514 = vpop.f32.mrb[0].mxu0
      %v515 = vadd.f32 0.0, %v514
      %v516 = vpop.f32.mrb[0].mxu0
      %517 = vdwg.mxu0
      %v518 = vsub.f32 0.0, %v510
      %v519 = vsub.f32 0.0, %v515
      %v520 = vmul.f32 %v518, 1.442695
      %v521 = vpow.pop %v520
      %v522 = vmul.f32 %v519, 1.442695
      %v523 = vpow.pop %v522
      %v524 = vadd.f32 %v521, 1.0
      %v525 = vadd.f32 %v523, 1.0
      %v526 = vrcp.pop %v524
      %v527 = vmul.f32 %v510, %v526
      %v528 = vrcp.pop %v525
      %v529 = vmul.f32 %v515, %v528
      %v530 = vld [vmem:[%s3] sm:$0xff]
      %v531 = vld [vmem:[%s3 + $0x8] sm:$0xff]
      %v532 = vld [vmem:[%s3 + $0x10] sm:$0xff]
      %v533 = vld [vmem:[%s3 + $0x18] sm:$0xff]
      %534 = vmatprep.subr.mxu0 0.0
      %535 = vmatpush1.msra.mxu0 %v530
      %536 = vmatprep.subr.mxu0 0.0
      %537 = vmatpush1.msra.mxu0 %v531
      %538 = vmatprep.subr.mxu0 0.0
      %539 = vmatpush1.msra.mxu0 %v532
      %540 = vmatprep.subr.mxu0 0.0
      %541 = vmatpush1.msra.mxu0 %v533
      %542 = vmatprep.subr.mxu0 0.0
      %543 = vmatpush1.msra.mxu0 0.0
      %544 = vmatprep.subr.mxu0 0.0
      %545 = vmatpush1.msra.mxu0 0.0
      %546 = vmatprep.subr.mxu0 0.0
      %547 = vmatpush1.msra.mxu0 0.0
      %548 = vmatprep.subr.mxu0 0.0
      %549 = vmatpush1.msra.mxu0 0.0
      %550 = vmatprep.subr.mxu0 0.0
      %551 = vmatpush1.msra.mxu0 0.0
      %552 = vmatprep.subr.mxu0 0.0
      %553 = vmatpush1.msra.mxu0 0.0
      %554 = vmatprep.subr.mxu0 0.0
      %555 = vmatpush1.msra.mxu0 0.0
      %556 = vmatprep.subr.mxu0 0.0
      %557 = vmatpush1.msra.mxu0 0.0
      %558 = vmatprep.subr.mxu0 0.0
      %559 = vmatpush1.msra.mxu0 0.0
      %560 = vmatprep.subr.mxu0 0.0
      %561 = vmatpush1.msra.mxu0 0.0
      %562 = vmatprep.subr.mxu0 0.0
      %563 = vmatpush1.msra.mxu0 0.0
      %564 = vmatprep.subr.mxu0 0.0
      %565 = vmatpush1.msra.mxu0 0.0
      %566 = vmatprep.subr.mxu0 0.0
      %567 = vmatpush1.msra.mxu0 0.0
      %568 = vmatprep.subr.mxu0 0.0
      %569 = vmatpush1.msra.mxu0 0.0
      %570 = vmatprep.subr.mxu0 0.0
      %571 = vmatpush1.msra.mxu0 0.0
      %572 = vmatprep.subr.mxu0 0.0
      %573 = vmatpush1.msra.mxu0 0.0
      %574 = vmatprep.subr.mxu0 0.0
      %575 = vmatpush1.msra.mxu0 0.0
      %576 = vmatprep.subr.mxu0 0.0
      %577 = vmatpush1.msra.mxu0 0.0
      %578 = vmatprep.subr.mxu0 0.0
      %579 = vmatpush1.msra.mxu0 0.0
      %580 = vmatprep.subr.mxu0 0.0
      %581 = vmatpush1.msra.mxu0 0.0
      %582 = vmatprep.subr.mxu0 0.0
      %583 = vmatpush1.msra.mxu0 0.0
      %584 = vmatprep.subr.mxu0 0.0
      %585 = vmatpush1.msra.mxu0 0.0
      %586 = vmatprep.subr.mxu0 0.0
      %587 = vmatpush1.msra.mxu0 0.0
      %588 = vmatprep.subr.mxu0 0.0
      %589 = vmatpush1.msra.mxu0 0.0
      %590 = vmatprep.subr.mxu0 0.0
      %591 = vmatpush1.msra.mxu0 0.0
      %592 = vmatprep.subr.mxu0 0.0
      %593 = vmatpush1.msra.mxu0 0.0
      %594 = vmatprep.subr.mxu0 0.0
      %595 = vmatpush1.msra.mxu0 0.0
      %596 = vmatprep.subr.mxu0 0.0
      %597 = vmatpush1.msra.mxu0 0.0
      %598 = vmatprep.mubr.f32.mxu0 0.0
      %599 = vmatmul.mubr.f32.gmra.mrb[0].mxu0 %v347
      %v600 = vpop.f32.mrb[0].mxu0
      %v601 = vadd.f32 0.0, %v600
      %v602 = vpop.f32.mrb[0].mxu0
      %603 = vmatprep.mubr.f32.mxu0 0.0
      %604 = vmatmul.mubr.f32.gmra.mrb[0].mxu0 %v350
      %v605 = vpop.f32.mrb[0].mxu0
      %v606 = vadd.f32 0.0, %v605
      %v607 = vpop.f32.mrb[0].mxu0
      %608 = vdwg.mxu0
      %v609 = vsub.f32 0.0, %v601
      %v610 = vsub.f32 0.0, %v606
      %v611 = vmul.f32 %v609, 1.442695
      %v612 = vpow.pop %v611
      %v613 = vmul.f32 %v610, 1.442695
      %v614 = vpow.pop %v613
      %v615 = vadd.f32 %v612, 1.0
      %v616 = vadd.f32 %v614, 1.0
      %v617 = vrcp.pop %v615
      %v618 = vmul.f32 %v601, %v617
      %v619 = vrcp.pop %v616
      %v620 = vmul.f32 %v606, %v619
      %v621 = vld [vmem:[%s4] sm:$0x1]
      %v622 = vlaneseq
      %v623 = vshrl.u32 %v622, 7
      %v624 = vsub.s32 0, %v623
      %v625 = vrot.slane %v621, %v624
      %v626 = vmul.f32 %v618, %v625
      %v627 = vmul.f32 %v620, %v625
      %v628 = vld [vmem:[%s5] sm:$0x1]
      %v629 = vlaneseq
      %v630 = vshrl.u32 %v629, 7
      %v631 = vsub.s32 0, %v630
      %v632 = vrot.slane %v628, %v631
      %v633 = vadd.f32 %v626, %v632
      %v634 = vadd.f32 %v627, %v632
      %v635 = vld [vmem:[%s4 + $0x1] sm:$0x1]
      %v636 = vlaneseq
      %v637 = vshrl.u32 %v636, 7
      %v638 = vsub.s32 0, %v637
      %v639 = vrot.slane %v635, %v638
      %v640 = vmul.f32 %v618, %v639
      %v641 = vmul.f32 %v620, %v639
      %v642 = vld [vmem:[%s5 + $0x1] sm:$0x1]
      %v643 = vlaneseq
      %v644 = vshrl.u32 %v643, 7
      %v645 = vsub.s32 0, %v644
      %v646 = vrot.slane %v642, %v645
      %v647 = vadd.f32 %v640, %v646
      %v648 = vadd.f32 %v641, %v646
      %vm649 = vcmask 130048
      %v651 = vsel %vm649, %v633, 0
      %v654 = vsel %vm649, %v634, 0
      %v657 = vsel %vm649, %v647, 0
      %v660 = vsel %vm649, %v648, 0
      %662 = vmatprep.subr.mxu0 0.0
      %663 = vmatpush1.xpose.msra.mxu0 %v657
      %664 = vmatprep.subr.mxu0 0.0
      %665 = vmatpush1.xpose.msra.mxu0 %v660
      %666 = vmatprep.subr.mxu0 0.0
      %667 = vmatpush1.xpose.msra.mxu0 0.0
      %668 = vmatprep.subr.mxu0 0.0
      %669 = vmatpush1.xpose.msra.mxu0 0.0
      %670 = vmatprep.subr.mxu0 0.0
      %671 = vmatpush1.xpose.msra.mxu0 0.0
      %672 = vmatprep.subr.mxu0 0.0
      %673 = vmatpush1.xpose.msra.mxu0 0.0
      %674 = vmatprep.subr.mxu0 0.0
      %675 = vmatpush1.xpose.msra.mxu0 0.0
      %676 = vmatprep.subr.mxu0 0.0
      %677 = vmatpush1.xpose.msra.mxu0 0.0
      %678 = vmatprep.subr.mxu0 0.0
      %679 = vmatpush1.xpose.msra.mxu0 0.0
      %680 = vmatprep.subr.mxu0 0.0
      %681 = vmatpush1.xpose.msra.mxu0 0.0
      %682 = vmatprep.subr.mxu0 0.0
      %683 = vmatpush1.xpose.msra.mxu0 0.0
      %684 = vmatprep.subr.mxu0 0.0
      %685 = vmatpush1.xpose.msra.mxu0 0.0
      %686 = vmatprep.subr.mxu0 0.0
      %687 = vmatpush1.xpose.msra.mxu0 0.0
      %688 = vmatprep.subr.mxu0 0.0
      %689 = vmatpush1.xpose.msra.mxu0 0.0
      %690 = vmatprep.subr.mxu0 0.0
      %691 = vmatpush1.xpose.msra.mxu0 0.0
      %692 = vmatprep.subr.mxu0 0.0
      %693 = vmatpush1.xpose.msra.mxu0 0.0
      %694 = vmatprep.subr.mxu0 0.0
      %695 = vmatpush1.xpose.msra.mxu0 0.0
      %696 = vmatprep.subr.mxu0 0.0
      %697 = vmatpush1.xpose.msra.mxu0 0.0
      %698 = vmatprep.subr.mxu0 0.0
      %699 = vmatpush1.xpose.msra.mxu0 0.0
      %700 = vmatprep.subr.mxu0 0.0
      %701 = vmatpush1.xpose.msra.mxu0 0.0
      %702 = vmatprep.subr.mxu0 0.0
      %703 = vmatpush1.xpose.msra.mxu0 0.0
      %704 = vmatprep.subr.mxu0 0.0
      %705 = vmatpush1.xpose.msra.mxu0 0.0
      %706 = vmatprep.subr.mxu0 0.0
      %707 = vmatpush1.xpose.msra.mxu0 0.0
      %708 = vmatprep.subr.mxu0 0.0
      %709 = vmatpush1.xpose.msra.mxu0 0.0
      %710 = vmatprep.subr.mxu0 0.0
      %711 = vmatpush1.xpose.msra.mxu0 0.0
      %712 = vmatprep.subr.mxu0 0.0
      %713 = vmatpush1.xpose.msra.mxu0 0.0
      %714 = vmatprep.subr.mxu0 0.0
      %715 = vmatpush1.xpose.msra.mxu0 0.0
      %716 = vmatprep.subr.mxu0 0.0
      %717 = vmatpush1.xpose.msra.mxu0 0.0
      %718 = vmatprep.subr.mxu0 0.0
      %719 = vmatpush1.xpose.msra.mxu0 0.0
      %720 = vmatprep.subr.mxu0 0.0
      %721 = vmatpush1.xpose.msra.mxu0 0.0
      %722 = vmatprep.subr.mxu0 0.0
      %723 = vmatpush1.xpose.msra.mxu0 0.0
      %724 = vmatprep.subr.mxu0 0.0
      %725 = vmatpush1.xpose.msra.mxu0 0.0
      %726 = vmatprep.mubr.f32.mxu0 0.0
      %727 = vmatmul.mubr.f32.gmra.mrb[0].mxu0 %v651
      %v728 = vpop.f32.mrb[0].mxu0
      %v729 = vadd.f32 0.0, %v728
      %v730 = vpop.f32.mrb[0].mxu0
      %731 = vmatprep.mubr.f32.mxu0 0.0
      %732 = vmatmul.mubr.f32.gmra.mrb[0].mxu0 %v654
      %v733 = vpop.f32.mrb[0].mxu0
      %v734 = vadd.f32 0.0, %v733
      %v735 = vpop.f32.mrb[0].mxu0
      %736 = vdwg.mxu0
      %v737 = vmul.f32 %v729, 0.25
      %v738 = vmul.f32 %v734, 0.25
      %v739 = vmax.f32 %v737, 0.0
      %v740 = vmax.f32 %v738, 0.0
      %v741 = vmul.f32 %v739, %v739
      %v742 = vmul.f32 %v740, %v740
      %vm743 = vcmask 121856
      %v745 = vsel %vm743, %v741, 0
      %v748 = vsel %vm743, %v742, 0
      %vm750 = vcmask 1046528
      %v752 = vsel %vm750, %v529, 0
      %754 = vmatprep.subr.mxu0 0.0
      %755 = vmatpush1.msra.mxu0 %v527
      %756 = vmatprep.subr.mxu0 0.0
      %757 = vmatpush1.msra.mxu0 %v752
      %758 = vmatprep.subr.mxu0 0.0
      %759 = vmatpush1.msra.mxu0 0.0
      %760 = vmatprep.subr.mxu0 0.0
      %761 = vmatpush1.msra.mxu0 0.0
      %762 = vmatprep.subr.mxu0 0.0
      %763 = vmatpush1.msra.mxu0 0.0
      %764 = vmatprep.subr.mxu0 0.0
      %765 = vmatpush1.msra.mxu0 0.0
      %766 = vmatprep.subr.mxu0 0.0
      %767 = vmatpush1.msra.mxu0 0.0
      %768 = vmatprep.subr.mxu0 0.0
      %769 = vmatpush1.msra.mxu0 0.0
      %770 = vmatprep.subr.mxu0 0.0
      %771 = vmatpush1.msra.mxu0 0.0
      %772 = vmatprep.subr.mxu0 0.0
      %773 = vmatpush1.msra.mxu0 0.0
      %774 = vmatprep.subr.mxu0 0.0
      %775 = vmatpush1.msra.mxu0 0.0
      %776 = vmatprep.subr.mxu0 0.0
      %777 = vmatpush1.msra.mxu0 0.0
      %778 = vmatprep.subr.mxu0 0.0
      %779 = vmatpush1.msra.mxu0 0.0
      %780 = vmatprep.subr.mxu0 0.0
      %781 = vmatpush1.msra.mxu0 0.0
      %782 = vmatprep.subr.mxu0 0.0
      %783 = vmatpush1.msra.mxu0 0.0
      %784 = vmatprep.subr.mxu0 0.0
      %785 = vmatpush1.msra.mxu0 0.0
      %786 = vmatprep.subr.mxu0 0.0
      %787 = vmatpush1.msra.mxu0 0.0
      %788 = vmatprep.subr.mxu0 0.0
      %789 = vmatpush1.msra.mxu0 0.0
      %790 = vmatprep.subr.mxu0 0.0
      %791 = vmatpush1.msra.mxu0 0.0
      %792 = vmatprep.subr.mxu0 0.0
      %793 = vmatpush1.msra.mxu0 0.0
      %794 = vmatprep.subr.mxu0 0.0
      %795 = vmatpush1.msra.mxu0 0.0
      %796 = vmatprep.subr.mxu0 0.0
      %797 = vmatpush1.msra.mxu0 0.0
      %798 = vmatprep.subr.mxu0 0.0
      %799 = vmatpush1.msra.mxu0 0.0
      %800 = vmatprep.subr.mxu0 0.0
      %801 = vmatpush1.msra.mxu0 0.0
      %802 = vmatprep.subr.mxu0 0.0
      %803 = vmatpush1.msra.mxu0 0.0
      %804 = vmatprep.subr.mxu0 0.0
      %805 = vmatpush1.msra.mxu0 0.0
      %806 = vmatprep.subr.mxu0 0.0
      %807 = vmatpush1.msra.mxu0 0.0
      %808 = vmatprep.subr.mxu0 0.0
      %809 = vmatpush1.msra.mxu0 0.0
      %810 = vmatprep.subr.mxu0 0.0
      %811 = vmatpush1.msra.mxu0 0.0
      %812 = vmatprep.subr.mxu0 0.0
      %813 = vmatpush1.msra.mxu0 0.0
      %814 = vmatprep.subr.mxu0 0.0
      %815 = vmatpush1.msra.mxu0 0.0
      %816 = vmatprep.subr.mxu0 0.0
      %817 = vmatpush1.msra.mxu0 0.0
      %818 = vmatprep.mubr.f32.mxu0 0.0
      %819 = vmatmul.mubr.f32.gmra.mrb[0].mxu0 %v745
      %v820 = vpop.f32.mrb[0].mxu0
      %v821 = vadd.f32 0.0, %v820
      %v822 = vpop.f32.mrb[0].mxu0
      %823 = vmatprep.mubr.f32.mxu0 0.0
      %824 = vmatmul.mubr.f32.gmra.mrb[0].mxu0 %v748
      %v825 = vpop.f32.mrb[0].mxu0
      %v826 = vadd.f32 0.0, %v825
      %v827 = vpop.f32.mrb[0].mxu0
      %828 = vdwg.mxu0
      %v829 = vmul.f32 %v436, %v821
      %v830 = vmul.f32 %v438, %v826
      %v831 = vld [vmem:[%s6] sm:$0xff]
      %v832 = vld [vmem:[%s6 + $0x8] sm:$0xff]
      %v833 = vld [vmem:[%s6 + $0x10] sm:$0xff]
      %v834 = vld [vmem:[%s6 + $0x18] sm:$0xff]
      %v835 = vld [vmem:[%s6 + $0x20] sm:$0xff]
      %v836 = vld [vmem:[%s6 + $0x28] sm:$0xff]
      %v837 = vld [vmem:[%s6 + $0x30] sm:$0xff]
      %v838 = vld [vmem:[%s6 + $0x38] sm:$0xff]
      %vm839 = vcmask 523264
      %v841 = vsel %vm839, %v829, 0
      %v844 = vsel %vm839, %v830, 0
      %846 = vmatprep.subr.mxu0 0.0
      %847 = vmatpush1.msra.mxu0 %v831
      %848 = vmatprep.subr.mxu0 0.0
      %849 = vmatpush1.msra.mxu0 %v832
      %850 = vmatprep.subr.mxu0 0.0
      %851 = vmatpush1.msra.mxu0 %v833
      %852 = vmatprep.subr.mxu0 0.0
      %853 = vmatpush1.msra.mxu0 %v834
      %854 = vmatprep.subr.mxu0 0.0
      %855 = vmatpush1.msra.mxu0 %v835
      %856 = vmatprep.subr.mxu0 0.0
      %857 = vmatpush1.msra.mxu0 %v836
      %858 = vmatprep.subr.mxu0 0.0
      %859 = vmatpush1.msra.mxu0 %v837
      %860 = vmatprep.subr.mxu0 0.0
      %861 = vmatpush1.msra.mxu0 %v838
      %862 = vmatprep.subr.mxu0 0.0
      %863 = vmatpush1.msra.mxu0 0.0
      %864 = vmatprep.subr.mxu0 0.0
      %865 = vmatpush1.msra.mxu0 0.0
      %866 = vmatprep.subr.mxu0 0.0
      %867 = vmatpush1.msra.mxu0 0.0
      %868 = vmatprep.subr.mxu0 0.0
      %869 = vmatpush1.msra.mxu0 0.0
      %870 = vmatprep.subr.mxu0 0.0
      %871 = vmatpush1.msra.mxu0 0.0
      %872 = vmatprep.subr.mxu0 0.0
      %873 = vmatpush1.msra.mxu0 0.0
      %874 = vmatprep.subr.mxu0 0.0
      %875 = vmatpush1.msra.mxu0 0.0
      %876 = vmatprep.subr.mxu0 0.0
      %877 = vmatpush1.msra.mxu0 0.0
      %878 = vmatprep.subr.mxu0 0.0
      %879 = vmatpush1.msra.mxu0 0.0
      %880 = vmatprep.subr.mxu0 0.0
      %881 = vmatpush1.msra.mxu0 0.0
      %882 = vmatprep.subr.mxu0 0.0
      %883 = vmatpush1.msra.mxu0 0.0
      %884 = vmatprep.subr.mxu0 0.0
      %885 = vmatpush1.msra.mxu0 0.0
      %886 = vmatprep.subr.mxu0 0.0
      %887 = vmatpush1.msra.mxu0 0.0
      %888 = vmatprep.subr.mxu0 0.0
      %889 = vmatpush1.msra.mxu0 0.0
      %890 = vmatprep.subr.mxu0 0.0
      %891 = vmatpush1.msra.mxu0 0.0
      %892 = vmatprep.subr.mxu0 0.0
      %893 = vmatpush1.msra.mxu0 0.0
      %894 = vmatprep.subr.mxu0 0.0
      %895 = vmatpush1.msra.mxu0 0.0
      %896 = vmatprep.subr.mxu0 0.0
      %897 = vmatpush1.msra.mxu0 0.0
      %898 = vmatprep.subr.mxu0 0.0
      %899 = vmatpush1.msra.mxu0 0.0
      %900 = vmatprep.subr.mxu0 0.0
      %901 = vmatpush1.msra.mxu0 0.0
      %902 = vmatprep.subr.mxu0 0.0
      %903 = vmatpush1.msra.mxu0 0.0
      %904 = vmatprep.subr.mxu0 0.0
      %905 = vmatpush1.msra.mxu0 0.0
      %906 = vmatprep.subr.mxu0 0.0
      %907 = vmatpush1.msra.mxu0 0.0
      %908 = vmatprep.subr.mxu0 0.0
      %909 = vmatpush1.msra.mxu0 0.0
      %910 = vmatprep.mubr.f32.mxu0 0.0
      %911 = vmatmul.mubr.f32.gmra.mrb[0].mxu0 %v841
      %v912 = vpop.f32.mrb[0].mxu0
      %v913 = vadd.f32 0.0, %v912
      %v914 = vpop.f32.mrb[0].mxu0
      %915 = vmatprep.mubr.f32.mxu0 0.0
      %916 = vmatmul.mubr.f32.gmra.mrb[0].mxu0 %v844
      %v917 = vpop.f32.mrb[0].mxu0
      %v918 = vadd.f32 0.0, %v917
      %v919 = vpop.f32.mrb[0].mxu0
      %920 = vdwg.mxu0
      %v921 = vld [vmem:[%s7] sm:$0x1]
      %v923 = vlaneseq
      %v924 = vshrl.u32 %v923, 7
      %v925 = vsub.s32 0, %v924
      %v926 = vrot.slane %v921, %v925
      %v928 = vmul.f32 %v306, %v926
      %v929 = vmul.f32 %v307, %v926
      %v930 = vadd.f32 %v928, %v913
      %v931 = vadd.f32 %v929, %v918
      %932 = vst.msk [vmem:[%s305] sm:$0xff] %vm310, %v930
      %933 = vst.msk [vmem:[%s305 + $0x8] sm:$0x7f] %vm314, %v931
      %p934 = scmp.lt.s32.totalorder %s19, 1
      %s935 = scalar_select %p934, %s19, 1
      %s936 = smul.addr %s935, 2
      %s937 = smul.addr %s936, 8
      %s938 = scalar_lea.vmem %s8, %s937
      // Predicated region
      $region53: #{tpu_custom_call.1} parent=51 // pred_check
        %p939 = pneg %p210
      $region54: #{tpu_custom_call.1} parent=51 // pred_check_branch
        %941 = sbr.rel (%p939) target = $region56
      $region55: #{tpu_custom_call.1} parent=51 // pred_region
        _
      $region56: #{tpu_custom_call.1} parent=51 // pred_fallthru
        _
    $region52: #{tpu_custom_call.1} parent=5 // pred_fallthru
      _
    %p942 = scmp.le.s32.totalorder 2, %s14
    // Predicated region
    $region57: #{tpu_custom_call.1} parent=5 // pred_check
      %p943 = pneg %p942
    $region58: #{tpu_custom_call.1} parent=5 // pred_check_branch
      %945 = sbr.rel (%p943) target = $region60
    $region59: #{tpu_custom_call.1} parent=5 // pred_region
      %s946 = ssub.s32 %s14, 2
      // Predicated region
      $region61: #{tpu_custom_call.1} parent=59 // pred_check
        %p947 = pneg %p216
      $region62: #{tpu_custom_call.1} parent=59 // pred_check_branch
        %949 = sbr.rel (%p947) target = $region64
      $region63: #{tpu_custom_call.1} parent=59 // pred_region
        %p950 = scmp.lt.s32.totalorder %s20, 1
        %s951 = scalar_select %p950, %s20, 1
        %s952 = smul.addr %s951, 2
        %s953 = smul.addr %s952, 8
        %s954 = scalar_lea.vmem %s8, %s953
      $region64: #{tpu_custom_call.1} parent=59 // pred_fallthru
        _
    $region60: #{tpu_custom_call.1} parent=5 // pred_fallthru
      _
  $region6: #{tpu_custom_call.1} parent=0 // loop_footer
    %s18 = sadd.s32 1, %s14
  $region7: #{tpu_custom_call.1} parent=0 // loop_footer_branch
    %13 = sbr.rel target = $region3
  $region8: #{tpu_custom_call.1} parent=0 // loop_exit
    _

</llo_original>
